<compile_context>
chip_gen: v6e
topology: v6e:2x2x1
jax: 0.10.0
libtpu: 0.0.40
codegen_flags: <defaults>
</compile_context>

<pallas_src>
import functools

import jax
import jax.numpy as jnp
from jax.experimental import pallas as pl
from jax.experimental.pallas import tpu as pltpu

_LANE = 128


def _sublane_align(dtype):
    # f32 -> 8, bf16/f16 -> 16, int8/fp8 -> 32 (sublane packing).
    itemsize = jnp.dtype(dtype).itemsize
    return (4 // itemsize) * 8


def _rmsnorm_kernel(x_ref, w_ref, o_ref, *, eps, hidden, inv_hidden):
    # (TM, Hpad) tile; reduction / normalization in float32 like `x.float()`.
    x = x_ref[...]
    xf = x.astype(jnp.float32)
    if hidden != x_ref.shape[-1]:
        # Lane-padded block: lanes >= hidden hold unspecified data; zero them
        # so the sum-of-squares (divided by the *true* hidden) stays exact.
        lane = jax.lax.broadcasted_iota(jnp.int32, xf.shape, dimension=1)
        xf = jnp.where(lane < hidden, xf, 0.0)
    ms = jnp.sum(xf * xf, axis=-1, keepdims=True) * inv_hidden
    norm = xf * jax.lax.rsqrt(ms + eps)                       # rsqrt on EUP
    # `.type_as(x)` roundtrip, then scale by weight (native dtype or f32 —
    # jnp promotion reproduces `output * self.weight` exactly).
    o_ref[...] = (norm.astype(x.dtype) * w_ref[...]).astype(o_ref.dtype)


def llama_skip_rmsnorm(x, weight, eps=1e-5, *, out_dtype=None,
                       vmem_budget_bytes=12 << 20, max_row_tile=512,
                       target_steps=8):
    """Pallas RMSNorm.  x: (..., hidden), weight: (hidden,)."""
    assert eps > 0, "eps must be > 0"
    orig_shape = x.shape
    hidden = orig_shape[-1]
    assert weight.shape == (hidden,)

    if out_dtype is None:
        # Matches PyTorch type promotion: f32 weight promotes output to f32.
        out_dtype = jnp.promote_types(x.dtype, weight.dtype)

    x2d = x.reshape(-1, hidden)
    n_rows = x2d.shape[0]

    # Weight: native dtype when it matches x/out (common bf16 case), else f32.
    if weight.dtype == x.dtype and jnp.dtype(out_dtype) == jnp.dtype(x.dtype):
        w_k = weight
    else:
        w_k = weight.astype(jnp.float32)

    # Lane axis rounded up to 128 for the *block*; the arrays themselves are
    # not padded (only the tiny weight is, so the resident multiply is dense).
    h_pad = pl.cdiv(hidden, _LANE) * _LANE
    if h_pad != hidden:
        w_k = jnp.pad(w_k, (0, h_pad - hidden))
    w2d = w_k.reshape(1, h_pad)

    # --- Row tile: largest sublane-aligned tile within the VMEM budget. ---
    align = _sublane_align(x.dtype)
    bytes_in = jnp.dtype(x.dtype).itemsize
    bytes_out = jnp.dtype(out_dtype).itemsize
    # Double-buffered in + out tiles plus live f32 intermediates (xf, norm).
    per_row = h_pad * (2 * bytes_in + 2 * bytes_out + 8)
    tm = max(align, (vmem_budget_bytes // per_row) // align * align)
    tm = min(tm, max_row_tile)
    # Keep at least ~target_steps grid steps (pipeline overlap + megacore
    # sharding) whenever there is enough data for that to make sense.
    if n_rows >= target_steps * align:
        tm = min(tm, pl.cdiv(pl.cdiv(n_rows, target_steps), align) * align)
    # Never bigger than the (sublane-rounded) data.
    tm = min(tm, pl.cdiv(n_rows, align) * align)

    grid = (pl.cdiv(n_rows, tm),)   # Pallas masks the partial last block.

    kernel = functools.partial(_rmsnorm_kernel, eps=eps, hidden=hidden,
                               inv_hidden=1.0 / float(hidden))

    cost = pl.CostEstimate(
        flops=4 * n_rows * hidden,
        transcendentals=n_rows,
        bytes_accessed=n_rows * hidden * (bytes_in + bytes_out)
        + hidden * jnp.dtype(w_k.dtype).itemsize,
    )

    out2d = pl.pallas_call(
        kernel,
        out_shape=jax.ShapeDtypeStruct((n_rows, hidden), out_dtype),
        grid_spec=pltpu.PrefetchScalarGridSpec(
            num_scalar_prefetch=0,
            grid=grid,
            in_specs=[
                pl.BlockSpec((tm, h_pad), lambda i: (i, 0)),   # x row tile
                pl.BlockSpec((1, h_pad), lambda i: (0, 0)),    # resident weight
            ],
            out_specs=pl.BlockSpec((tm, h_pad), lambda i: (i, 0)),
        ),
        compiler_params=pltpu.CompilerParams(
            dimension_semantics=("parallel",),
            vmem_limit_bytes=32 << 20,
        ),
        cost_estimate=cost,
    )(x2d, w2d)

    return out2d.reshape(orig_shape)


def _reference(x, weight, eps=1e-5):
    xf = x.astype(jnp.float32)
    norm = xf * jax.lax.rsqrt(jnp.mean(xf * xf, axis=-1, keepdims=True) + eps)
    out = norm.astype(x.dtype) * weight.astype(jnp.float32)
    return out.astype(jnp.promote_types(x.dtype, weight.dtype))


if __name__ == "__main__":
    key = jax.random.PRNGKey(0)
    batch, seq, hidden = 2, 8, 32

    kx, kw = jax.random.split(key)
    x = jax.random.normal(kx, (batch, seq, hidden), dtype=jnp.float32)
    # nn.Parameter(torch.ones(hidden_size)) plus a small perturbation so the
    # per-channel scaling is actually exercised.
    weight = jnp.ones((hidden,), dtype=jnp.float32) \
        + 0.01 * jax.random.normal(kw, (hidden,), dtype=jnp.float32)

    out = jax.block_until_ready(llama_skip_rmsnorm(x, weight, eps=1e-5))
    ref = _reference(x, weight, eps=1e-5)
    assert out.shape == x.shape and out.dtype == jnp.float32
    assert jnp.allclose(out, ref, atol=1e-5, rtol=1e-5), "mismatch vs reference"

    # bf16 input, f32 weight (norm in f32, .type_as roundtrip, f32 output).
    xb = x.astype(jnp.bfloat16)
    outb = jax.block_until_ready(llama_skip_rmsnorm(xb, weight, eps=1e-5))
    refb = _reference(xb, weight, eps=1e-5)
    assert outb.dtype == refb.dtype
    assert jnp.allclose(outb.astype(jnp.float32), refb.astype(jnp.float32),
                        atol=2e-2, rtol=2e-2)

    # bf16 input, bf16 weight: native-dtype weight path (bf16 output, multiply
    # done in bf16, exactly like PyTorch with a bf16 parameter).
    wb = weight.astype(jnp.bfloat16)
    outbb = jax.block_until_ready(llama_skip_rmsnorm(xb, wb, eps=1e-5))
    assert outbb.dtype == jnp.bfloat16
    assert jnp.allclose(outbb.astype(jnp.float32),
                        _reference(xb, wb, eps=1e-5).astype(jnp.float32),
                        atol=2e-2, rtol=2e-2)

    # Non-divisible row count exercises the masked partial-last-block path.
    x_odd = jax.random.normal(kx, (3, 5, hidden), dtype=jnp.float32)
    out_odd = jax.block_until_ready(llama_skip_rmsnorm(x_odd, weight, eps=1e-5))
    assert jnp.allclose(out_odd, _reference(x_odd, weight, eps=1e-5),
                        atol=1e-5, rtol=1e-5)

    print("KERNEL_OK")
</pallas_src>

<mosaic_0001>
module attributes {stable_mosaic.version = 11 : i64} {
  func.func @_rmsnorm_kernel(%arg0: i32, %arg1: memref<16x128xf32, #tpu.memory_space<vmem>>, %arg2: memref<1x128xf32, #tpu.memory_space<vmem>>, %arg3: memref<16x128xf32, #tpu.memory_space<vmem>>) attributes {dimension_semantics = [#tpu.dimension_semantics<parallel>], iteration_bounds = array<i64: 1>, scalar_prefetch = 0 : i64, scratch_operands = 0 : i64, tpu.core_type = #tpu.core_type<tc>, window_params = [{transform_indices = @transform_0, window_bounds = array<i64: 16, 128>}, {pipeline_mode = #tpu.pipeline_mode<synchronous>, transform_indices = @transform_1, window_bounds = array<i64: 1, 128>}, {transform_indices = @transform_2, window_bounds = array<i64: 16, 128>}]} {
    %c0 = arith.constant 0 : index
    %c0_0 = arith.constant 0 : index
    %0 = vector.load %arg1[%c0, %c0_0] : memref<16x128xf32, #tpu.memory_space<vmem>>, vector<16x128xf32>
    %1 = tpu.iota {dimensions = array<i32: 1>} : vector<16x128xi32>
    %c32_i32 = arith.constant 32 : i32
    %2 = vector.broadcast %c32_i32 : i32 to vector<16x128xi32>
    %3 = arith.cmpi slt, %1, %2 : vector<16x128xi32>
    %cst = arith.constant 0.000000e+00 : f32
    %4 = vector.broadcast %cst : f32 to vector<16x128xf32>
    %5 = arith.select %3, %0, %4 : vector<16x128xi1>, vector<16x128xf32>
    %6 = arith.mulf %5, %5 : vector<16x128xf32>
    %cst_1 = arith.constant dense<0.000000e+00> : vector<16xf32>
    %7 = vector.multi_reduction <add>, %6, %cst_1 [1] : vector<16x128xf32> to vector<16xf32>
    %8 = vector.shape_cast %7 : vector<16xf32> to vector<16x1xf32>
    %cst_2 = arith.constant 3.125000e-02 : f32
    %9 = vector.broadcast %cst_2 : f32 to vector<16x1xf32>
    %10 = arith.mulf %8, %9 : vector<16x1xf32>
    %cst_3 = arith.constant 9.99999974E-6 : f32
    %11 = vector.broadcast %cst_3 : f32 to vector<16x1xf32>
    %12 = arith.addf %10, %11 : vector<16x1xf32>
    %13 = math.rsqrt %12 : vector<16x1xf32>
    %14 = vector.broadcast %13 : vector<16x1xf32> to vector<16x128xf32>
    %15 = arith.mulf %5, %14 : vector<16x128xf32>
    %c0_4 = arith.constant 0 : index
    %c0_5 = arith.constant 0 : index
    %16 = vector.load %arg2[%c0_4, %c0_5] : memref<1x128xf32, #tpu.memory_space<vmem>>, vector<1x128xf32>
    %17 = vector.broadcast %16 : vector<1x128xf32> to vector<16x128xf32>
    %18 = arith.mulf %15, %17 : vector<16x128xf32>
    %c0_6 = arith.constant 0 : index
    %c0_7 = arith.constant 0 : index
    %19 = vector.load %arg3[%c0_6, %c0_7] : memref<16x128xf32, #tpu.memory_space<vmem>>, vector<16x128xf32>
    tpu.vector_store %arg3[%c0_6, %c0_7], %18 {strides = array<i32>} : memref<16x128xf32, #tpu.memory_space<vmem>>, vector<16x128xf32>,
    return
  }
  func.func @transform_0(%arg0: i32) -> (i32, i32) {
    %c0_i32 = arith.constant 0 : i32
    %c0_i32_0 = arith.constant 0 : i32
    return %arg0, %c0_i32 : i32, i32
  }
  func.func @transform_1(%arg0: i32) -> (i32, i32) {
    %c0_i32 = arith.constant 0 : i32
    %c0_i32_0 = arith.constant 0 : i32
    %c0_i32_1 = arith.constant 0 : i32
    return %c0_i32, %c0_i32_0 : i32, i32
  }
  func.func @transform_2(%arg0: i32) -> (i32, i32) {
    %c0_i32 = arith.constant 0 : i32
    %c0_i32_0 = arith.constant 0 : i32
    return %arg0, %c0_i32 : i32, i32
  }
}

</mosaic_0001>

<llo_original>
// kernel: tpu_custom_call.1
$region0: #{tpu_custom_call.1}
  #allocation0 [shape = 'u32[]', space=smem, size = 0x4, offset = 0x4, fixed_abs, tag = 'smem constant byte address 0x4 - core index']
  #allocation1 [shape = 'u32[144,128]{1,0:T(1,128)}', space=vmem, size = 0x12000, scoped, tag = 'internal scratch']
  %s0 = inlined_call_operand.hbm [shape: f32[16,32], index: 0, kind: input, shape index: {}]
  %s1 = inlined_call_operand.vmem [shape: f32[1,128], index: 1, kind: input, shape index: {}]
  %s2 = inlined_call_operand.hbm [shape: f32[16,32], index: 2, kind: output, shape index: {}]
  %s3 = sld [smem:[#allocation0]]
  $region22: #{tpu_custom_call.1} parent=0
    _
  %s5 = ssub.s32 1, %s3
  %s6 = scalar_select 0, %s5, %s3
  $region1: #{tpu_custom_call.1} parent=0
    #allocation2 [shape = 'u8[8192]{0}', space=vmem, size = 0x2000, scoped, tag = 'input window, operand 0, single buffered']
    #allocation3 [shape = 's32[1]{0}', space=sflag, size = 0x4, scoped, tag = 'scoped memory for tpu_custom_call.1']
    #allocation4 [shape = 's32[1]{0}', space=sflag, size = 0x4, scoped, tag = 'scoped memory for tpu_custom_call.1']
    #allocation5 [shape = 'u8[8192]{0}', space=vmem, size = 0x2000, scoped, tag = 'output window, operand 0, single buffered']
    %7 = vsyncpa [#allocation3], 0
    %8 = vsyncpa [#allocation4], 0
    // Predicated region
    $region2: #{tpu_custom_call.1} parent=1 // pred_check
      _
    $region3: #{tpu_custom_call.1} parent=1 // pred_check_branch
      %10 = sbr.rel (0) target = $region5
    $region4: #{tpu_custom_call.1} parent=1 // pred_region
      %s12 = ssub.s32 256, 256
      %13 = vsyncadd [#allocation3], %s12
      %s14 = sshll.u32 [#allocation2], 4
      %s15 = int_to_ptr.vmem [resolvable:$true] %s14
      %20 = dma.hbm_to_vmem [thread:$0]  %s0, 256, %s15, [#allocation3], 128, 128, 8
    $region5: #{tpu_custom_call.1} parent=1 // pred_fallthru
      _
    // Predicated region
    $region6: #{tpu_custom_call.1} parent=1 // pred_check
      _
    $region7: #{tpu_custom_call.1} parent=1 // pred_check_branch
      %22 = sbr.rel (0) target = $region9
    $region8: #{tpu_custom_call.1} parent=1 // pred_region
      _
    $region9: #{tpu_custom_call.1} parent=1 // pred_fallthru
      _
    // Predicated region
    $region10: #{tpu_custom_call.1} parent=1 // pred_check
      _
    $region11: #{tpu_custom_call.1} parent=1 // pred_check_branch
      %24 = sbr.rel (0) target = $region13
    $region12: #{tpu_custom_call.1} parent=1 // pred_region
      %25 = dma.done [#allocation3], 256
    $region13: #{tpu_custom_call.1} parent=1 // pred_fallthru
      _
    %v26 = vld [vmem:[#allocation2] sm:$0xff]
    %v27 = vld [vmem:[#allocation2 + $0x8] sm:$0xff]
    %v28 = vlaneseq
    %v29 = vand.u32 %v28, 127
    %vm30 = vcmp.lt.s32.totalorder %v29, 32
    %v31 = vsel %vm30, %v26, 0.0
    %v32 = vsel %vm30, %v27, 0.0
    %v33 = vmul.f32 %v31, %v31
    %v34 = vmul.f32 %v32, %v32
    %35 = vadd.xlane.f32.xlu0 %v33
    %v36 = vpop.xlane.xlu0 %35
    %37 = vadd.xlane.f32.xlu0 %v34
    %v38 = vpop.xlane.xlu0 %37
    %v39 = vmul.f32 %v36, 0.03125
    %v40 = vmul.f32 %v38, 0.03125
    %v41 = vadd.f32 %v39, 1e-05
    %v42 = vadd.f32 %v40, 1e-05
    %v43 = vrsqrt.pop %v41
    %v44 = vrsqrt.pop %v42
    %v45 = vmul.f32 %v31, %v43
    %v46 = vmul.f32 %v32, %v44
    %v47 = vld [vmem:[%s1] sm:$0x1]
    %v49 = vlaneseq
    %v50 = vshrl.u32 %v49, 7
    %v51 = vsub.s32 0, %v50
    %v52 = vrot.slane %v47, %v51
    %v54 = vmul.f32 %v45, %v52
    %v55 = vmul.f32 %v46, %v52
    %56 = vst [vmem:[#allocation5] sm:$0xff] %v54
    %57 = vst [vmem:[#allocation5 + $0x8] sm:$0xff] %v55
    // Predicated region
    $region14: #{tpu_custom_call.1} parent=1 // pred_check
      _
    $region15: #{tpu_custom_call.1} parent=1 // pred_check_branch
      %59 = sbr.rel (0) target = $region17
    $region16: #{tpu_custom_call.1} parent=1 // pred_region
      %s61 = ssub.s32 256, 256
      %62 = vsyncadd [#allocation4], %s61
      %s63 = sshll.u32 [#allocation5], 4
      %s64 = int_to_ptr.vmem [resolvable:$true] %s63
      %69 = dma.vmem_to_hbm [thread:$0]  %s64, 256, %s2, [#allocation4], 128, 128, 8
    $region17: #{tpu_custom_call.1} parent=1 // pred_fallthru
      _
    // Predicated region
    $region18: #{tpu_custom_call.1} parent=1 // pred_check
      _
    $region19: #{tpu_custom_call.1} parent=1 // pred_check_branch
      %71 = sbr.rel (0) target = $region21
    $region20: #{tpu_custom_call.1} parent=1 // pred_region
      %72 = dma.done [#allocation4], 256
    $region21: #{tpu_custom_call.1} parent=1 // pred_fallthru
      _
    %73 = vsyncpa [#allocation3], 1
    %74 = vsyncpa [#allocation4], 1

</llo_original>
